<compile_context>
chip_gen: v7x
topology: tpu7x:2x2x1
jax: 0.10.0
libtpu: 0.0.40
codegen_flags: <defaults>
</compile_context>

<pallas_src>
import functools

import jax
import jax.numpy as jnp
import numpy as np
from jax.experimental import pallas as pl
from jax.experimental.pallas import tpu as pltpu


# ---------------------------------------------------------------------------- kernel


def _pe_add_kernel(x_ref, pe_ref, o_ref):
    # x_ref / o_ref: (TB, TR, L) block covering TB batch elements.
    # pe_ref:        (TR, L) fp32 positional-encoding tile, resident across batch steps.
    x = x_ref[...].astype(jnp.float32)
    o_ref[...] = (x + pe_ref[...][None, :, :]).astype(o_ref.dtype)


# ---------------------------------------------------------------------------- helpers


@functools.lru_cache(maxsize=None)
def _sinusoidal_table(S, H):
    """(S, H) float32 numpy table, exactly mirroring the PyTorch module's buffer."""
    pos = np.arange(S, dtype=np.float32).reshape(-1, 1)                         # (S, 1)
    div = np.power(10000.0, np.arange(0, H, 2, dtype=np.float32) / float(H))    # (H//2,)
    ang = pos / div                                                             # (S, H//2)
    pe = np.zeros((S, H), dtype=np.float32)
    pe[:, 0::2] = np.sin(ang)
    pe[:, 1::2] = np.cos(ang)
    return pe


def _sublane_multiple(itemsize):
    # Native sublane packing: 8 rows for 4-byte, 16 for 2-byte, 32 for 1-byte dtypes.
    return {4: 8, 2: 16, 1: 32}.get(itemsize, 8)


def _choose_layout(S, H, max_lane=2048):
    """Fold (S, H) into (R, L) with L a multiple of 128 when possible (lane-dense stores)."""
    N = S * H
    if N % 128 == 0:
        L = 128
        while L * 2 <= max_lane and N % (L * 2) == 0:
            L *= 2
        return N // L, L
    # Fallback: keep (S, H); stores are masked if H < 128 but semantics are unchanged.
    return S, H


def _choose_tiles(B, R, L, itemsize, target_bytes=4 * 1024 * 1024):
    """Pick (tb, tr): batch elements and rows per block, ~target_bytes per x block."""
    m = _sublane_multiple(itemsize)
    row_bytes = L * itemsize
    slab_bytes = R * row_bytes  # one full batch element in the (R, L) view

    if slab_bytes >= target_bytes:
        # Tile rows within a single batch element.
        tr = max(m, (target_bytes // max(1, row_bytes)) // m * m)
        tr = min(tr, R)
        for cand in range(tr, m - 1, -m):       # prefer a tile that divides R
            if R % cand == 0:
                return 1, cand
        return 1, tr                            # ragged tail is masked by Pallas (correct)

    # Whole row-slab fits comfortably: block several batch elements per grid step.
    tb = max(1, target_bytes // max(1, slab_bytes))
    tb = min(tb, B)
    for cand in range(tb, 0, -1):               # prefer a tile that divides B
        if B % cand == 0:
            return cand, R
    return tb, R


# ---------------------------------------------------------------------------- wrapper


def positional_encoding(x, max_len=1000, *, donate_x=False):
    """x: (B, S, H). Returns x + sinusoidal positional encoding (dropout p=0 -> identity)."""
    B, S, H = x.shape
    assert S <= max_len, "sequence longer than max_len"
    assert H % 2 == 0, "num_hiddens must be even (same constraint as the PyTorch module)"

    itemsize = jnp.dtype(x.dtype).itemsize
    R, L = _choose_layout(S, H)                 # lane-dense view of one batch element
    tb, tr = _choose_tiles(B, R, L, itemsize)   # ~4 MiB x blocks, dtype-aware rounding

    x_v = x.reshape(B, R, L)
    pe_v = jnp.asarray(_sinusoidal_table(S, H).reshape(R, L))   # fp32, baked constant

    grid = (pl.cdiv(R, tr), pl.cdiv(B, tb))     # batch innermost -> PE tile stays resident

    extra = {"input_output_aliases": {0: 0}} if donate_x else {}

    out_v = pl.pallas_call(
        _pe_add_kernel,
        out_shape=jax.ShapeDtypeStruct((B, R, L), x.dtype),
        grid=grid,
        in_specs=[
            pl.BlockSpec((tb, tr, L), lambda r, b: (b, r, 0)),   # X block
            pl.BlockSpec((tr, L), lambda r, b: (r, 0)),          # PE block, batch-invariant
        ],
        out_specs=pl.BlockSpec((tb, tr, L), lambda r, b: (b, r, 0)),
        compiler_params=pltpu.CompilerParams(
            dimension_semantics=("parallel", "parallel"),  # independent axes -> megacore shardable
            vmem_limit_bytes=48 * 1024 * 1024,             # > v5e's 16 MiB default, < v7x's 64 MiB
        ),
        **extra,
    )(x_v, pe_v)

    return out_v.reshape(B, S, H)


# ---------------------------------------------------------------------------- test


def _reference(x):
    """Pure numpy reference reproducing the PyTorch module (dropout p=0)."""
    B, S, H = x.shape
    pos = np.arange(S, dtype=np.float32).reshape(-1, 1)
    div = np.power(10000.0, np.arange(0, H, 2, dtype=np.float32) / H)
    ang = pos / div
    P = np.zeros((1, S, H), dtype=np.float32)
    P[:, :, 0::2] = np.sin(ang)
    P[:, :, 1::2] = np.cos(ang)
    return x + P


if __name__ == "__main__":
    key = jax.random.PRNGKey(0)
    B, S, H = 2, 8, 32
    x = jax.random.normal(key, (B, S, H), dtype=jnp.float32)
    x_np = np.asarray(x)  # snapshot before the call (donate_x defaults to False anyway)

    out = jax.block_until_ready(positional_encoding(x))

    np.testing.assert_allclose(np.asarray(out), _reference(x_np), rtol=1e-5, atol=1e-5)

    print("KERNEL_OK")
</pallas_src>

<mosaic_0001>
module attributes {stable_mosaic.version = 11 : i64} {
  func.func @_pe_add_kernel(%arg0: i32, %arg1: i32, %arg2: memref<2x1x256xf32, #tpu.memory_space<vmem>>, %arg3: memref<1x256xf32, #tpu.memory_space<vmem>>, %arg4: memref<2x1x256xf32, #tpu.memory_space<vmem>>) attributes {dimension_semantics = [#tpu.dimension_semantics<parallel>, #tpu.dimension_semantics<parallel>], iteration_bounds = array<i64: 1, 1>, scalar_prefetch = 0 : i64, scratch_operands = 0 : i64, tpu.core_type = #tpu.core_type<tc>, window_params = [{transform_indices = @transform_0, window_bounds = array<i64: 2, 1, 256>}, {transform_indices = @transform_1, window_bounds = array<i64: 1, 256>}, {transform_indices = @transform_2, window_bounds = array<i64: 2, 1, 256>}]} {
    %c0 = arith.constant 0 : index
    %c0_0 = arith.constant 0 : index
    %c0_1 = arith.constant 0 : index
    %0 = vector.load %arg2[%c0, %c0_0, %c0_1] : memref<2x1x256xf32, #tpu.memory_space<vmem>>, vector<2x1x256xf32>
    %c0_2 = arith.constant 0 : index
    %c0_3 = arith.constant 0 : index
    %1 = vector.load %arg3[%c0_2, %c0_3] : memref<1x256xf32, #tpu.memory_space<vmem>>, vector<1x256xf32>
    %2 = vector.shape_cast %1 : vector<1x256xf32> to vector<1x1x256xf32>
    %3 = vector.broadcast %2 : vector<1x1x256xf32> to vector<2x1x256xf32>
    %4 = arith.addf %0, %3 : vector<2x1x256xf32>
    %c0_4 = arith.constant 0 : index
    %c0_5 = arith.constant 0 : index
    %c0_6 = arith.constant 0 : index
    %5 = vector.load %arg4[%c0_4, %c0_5, %c0_6] : memref<2x1x256xf32, #tpu.memory_space<vmem>>, vector<2x1x256xf32>
    tpu.vector_store %arg4[%c0_4, %c0_5, %c0_6], %4 {strides = array<i32>} : memref<2x1x256xf32, #tpu.memory_space<vmem>>, vector<2x1x256xf32>,
    return
  }
  func.func @transform_0(%arg0: i32, %arg1: i32) -> (i32, i32, i32) {
    %c0_i32 = arith.constant 0 : i32
    %c0_i32_0 = arith.constant 0 : i32
    return %arg1, %arg0, %c0_i32 : i32, i32, i32
  }
  func.func @transform_1(%arg0: i32, %arg1: i32) -> (i32, i32) {
    %c0_i32 = arith.constant 0 : i32
    %c0_i32_0 = arith.constant 0 : i32
    return %arg0, %c0_i32 : i32, i32
  }
  func.func @transform_2(%arg0: i32, %arg1: i32) -> (i32, i32, i32) {
    %c0_i32 = arith.constant 0 : i32
    %c0_i32_0 = arith.constant 0 : i32
    return %arg1, %arg0, %c0_i32 : i32, i32, i32
  }
}

</mosaic_0001>

<llo_original>
// kernel: tpu_custom_call.1
$region0: #{tpu_custom_call.1}
  #allocation0 [shape = 'u32[]', space=smem, size = 0x4, offset = 0x4, fixed_abs, tag = 'smem constant byte address 0x4 - core index']
  #allocation1 [shape = 'u32[144,128]{1,0:T(1,128)}', space=vmem, size = 0x12000, scoped, tag = 'internal scratch']
  %s0 = inlined_call_operand.hbm [shape: f32[2,1,256], index: 0, kind: input, shape index: {}]
  %s1 = inlined_call_operand.vmem [shape: f32[1,256], index: 1, kind: input, shape index: {}]
  %s2 = inlined_call_operand.hbm [shape: f32[2,1,256], index: 2, kind: output, shape index: {}]
  %s3 = sld [smem:[#allocation0]]
  $region22: #{tpu_custom_call.1} parent=0
    _
  %s5 = ssub.s32 1, %s3
  %s6 = scalar_select 0, %s5, %s3
  $region1: #{tpu_custom_call.1} parent=0
    #allocation2 [shape = 'u8[2048]{0}', space=vmem, size = 0x800, scoped, tag = 'input window, operand 0, single buffered']
    #allocation3 [shape = 's32[1]{0}', space=sflag, size = 0x4, scoped, tag = 'scoped memory for tpu_custom_call.1']
    #allocation4 [shape = 's32[1]{0}', space=sflag, size = 0x4, scoped, tag = 'scoped memory for tpu_custom_call.1']
    #allocation5 [shape = 'u8[2048]{0}', space=vmem, size = 0x800, scoped, tag = 'output window, operand 0, single buffered']
    %7 = vsyncpa [#allocation3], 0
    %8 = vsyncpa [#allocation4], 0
    // Predicated region
    $region2: #{tpu_custom_call.1} parent=1 // pred_check
      _
    $region3: #{tpu_custom_call.1} parent=1 // pred_check_branch
      %10 = sbr.rel (0) target = $region5
    $region4: #{tpu_custom_call.1} parent=1 // pred_region
      %s12 = ssub.s32 64, 64
      %13 = vsyncadd [#allocation3], %s12
      %s14 = sshll.u32 [#allocation2], 4
      %s15 = int_to_ptr.vmem [resolvable:$true] %s14
      %20 = dma.hbm_to_vmem [thread:$0]  %s0, 64, %s15, [#allocation3], 32, 32, 2
    $region5: #{tpu_custom_call.1} parent=1 // pred_fallthru
      _
    // Predicated region
    $region6: #{tpu_custom_call.1} parent=1 // pred_check
      _
    $region7: #{tpu_custom_call.1} parent=1 // pred_check_branch
      %22 = sbr.rel (0) target = $region9
    $region8: #{tpu_custom_call.1} parent=1 // pred_region
      _
    $region9: #{tpu_custom_call.1} parent=1 // pred_fallthru
      _
    // Predicated region
    $region10: #{tpu_custom_call.1} parent=1 // pred_check
      _
    $region11: #{tpu_custom_call.1} parent=1 // pred_check_branch
      %24 = sbr.rel (0) target = $region13
    $region12: #{tpu_custom_call.1} parent=1 // pred_region
      %25 = dma.done [#allocation3], 64
    $region13: #{tpu_custom_call.1} parent=1 // pred_fallthru
      _
    %v26 = vld [vmem:[#allocation2] sm:$0x3]
    %v27 = vld [vmem:[#allocation2 + $0x2] sm:$0x3]
    %v28 = vld [vmem:[%s1] sm:$0x3]
    %v29 = vadd.f32 %v26, %v28
    %v30 = vadd.f32 %v27, %v28
    %v31 = vlaneseq
    %vm32 = vcmp.ge.s32.totalorder %v31, 0
    %vm33 = vcmp.lt.s32.totalorder %v31, 256
    %vm34 = vmand %vm32, %vm33
    %35 = vst.msk [vmem:[#allocation5] sm:$0x3] %vm34, %v29
    %36 = vst.msk [vmem:[#allocation5 + $0x2] sm:$0x3] %vm34, %v30
    // Predicated region
    $region14: #{tpu_custom_call.1} parent=1 // pred_check
      _
    $region15: #{tpu_custom_call.1} parent=1 // pred_check_branch
      %38 = sbr.rel (0) target = $region17
    $region16: #{tpu_custom_call.1} parent=1 // pred_region
      %s40 = ssub.s32 64, 64
      %41 = vsyncadd [#allocation4], %s40
      %s42 = sshll.u32 [#allocation5], 4
      %s43 = int_to_ptr.vmem [resolvable:$true] %s42
      %48 = dma.vmem_to_hbm [thread:$0]  %s43, 64, %s2, [#allocation4], 32, 32, 2
    $region17: #{tpu_custom_call.1} parent=1 // pred_fallthru
      _
    // Predicated region
    $region18: #{tpu_custom_call.1} parent=1 // pred_check
      _
    $region19: #{tpu_custom_call.1} parent=1 // pred_check_branch
      %50 = sbr.rel (0) target = $region21
    $region20: #{tpu_custom_call.1} parent=1 // pred_region
      %51 = dma.done [#allocation4], 64
    $region21: #{tpu_custom_call.1} parent=1 // pred_fallthru
      _
    %52 = vsyncpa [#allocation3], 1
    %53 = vsyncpa [#allocation4], 1

</llo_original>
